<compile_context>
chip_gen: v7x
topology: tpu7x:2x2x1
jax: 0.10.0
libtpu: 0.0.40
codegen_flags: <defaults>
</compile_context>

<pallas_src>
import jax
import jax.numpy as jnp
from jax.experimental import pallas as pl
from jax.experimental.pallas import tpu as pltpu


def _round_up(x, m):
    return (x + m - 1) // m * m


def _nf_kernel(zt_ref, w_ref, ut_ref, b_ref, g_ref, zt_out_ref, ld_out_ref):
    # zt_ref: (dim, TB) transposed batch tile (batch on lanes -> lane-dense).
    z0 = zt_ref[...]                                   # (dim, TB) f32
    n_flows = w_ref.shape[0]
    tb = z0.shape[1]

    # One MXU matmul replaces all per-flow cross-lane w.z reductions.
    #   s0[k, :] = w_k . z0
    s0 = jnp.dot(w_ref[...], z0,
                 preferred_element_type=jnp.float32)   # (n_flows, TB)
    ut = ut_ref[...]                                   # (dim, n_flows), loaded once

    ld = jnp.zeros((1, tb), dtype=jnp.float32)
    z_upd = jnp.zeros_like(z0)
    ts = []
    # n_flows is small & static -> static unroll of the serial flow chain.
    # TODO(synk): switch to lax.fori_loop(..., unroll=True) if n_flows grows.
    for k in range(n_flows):
        # wzb_k = w_k . z_k + b_k  with  z_k = z0 + sum_{j<k} u_j * t_j
        #       = s0[k] + sum_{j<k} (w_k . u_j) * t_j + b_k
        wzb = s0[k:k + 1, :] + b_ref[k]                # (1, TB) lane-dense
        for j in range(k):
            wzb = wzb + g_ref[k, j] * ts[j]
        t = jnp.tanh(wzb)                              # (1, TB), EUP
        # log-det uses z BEFORE the update; G[k, k] == u_k . w_k (hoisted).
        ld = ld + jnp.log(jnp.abs(1.0 + g_ref[k, k] * (1.0 - t * t)))
        # Planar update contribution u_k * t_k  (broadcast FMA on the VPU).
        z_upd = z_upd + ut[:, k:k + 1] * t             # (dim, TB)
        ts.append(t)

    zt_out_ref[...] = z0 + z_upd                       # single lane-dense store
    ld_out_ref[...] = ld


def normalizing_flow_forward(z, w, u, b, *, block_b=1024):
    """z: (B, dim) f32; w, u: (n_flows, dim) f32; b: (n_flows, 1) f32.
    Returns (z_out (B, dim), log_det (B,))."""
    z = jnp.asarray(z, jnp.float32)
    w = jnp.asarray(w, jnp.float32)
    u = jnp.asarray(u, jnp.float32)
    b = jnp.asarray(b, jnp.float32)
    B, dim = z.shape
    n_flows = w.shape[0]

    # Batch tile is the lane axis in the transposed layout -> multiple of 128.
    # VMEM per tile ~ 2 bufs * (in + out) * TB * dim * 4B; tiny even on v7x (64 MiB).
    tb = min(_round_up(block_b, 128), _round_up(B, 128))
    b_pad = _round_up(B, tb)
    num_tiles = b_pad // tb

    # Wrapper-side layout plumbing: transposed, lane-dense z slab.
    zt = jnp.pad(z.T, ((0, 0), (0, b_pad - B)))        # (dim, B_pad)
    ut = u.T                                           # (dim, n_flows)
    # Hoisted parameter-only reductions: G[k, j] = w_k . u_j (diag = u_k . w_k).
    g = jnp.dot(w, u.T)                                # (n_flows, n_flows)
    b_flat = b.reshape(n_flows)

    zt_out, ld_out = pl.pallas_call(
        _nf_kernel,
        grid=(num_tiles,),
        in_specs=[
            pl.BlockSpec((dim, tb), lambda i: (0, i)),          # z tile (streamed)
            pl.BlockSpec((n_flows, dim), lambda i: (0, 0)),     # W (resident)
            pl.BlockSpec((dim, n_flows), lambda i: (0, 0)),     # U^T (resident)
            pl.BlockSpec(memory_space=pltpu.MemorySpace.SMEM),  # b  (scalars)
            pl.BlockSpec(memory_space=pltpu.MemorySpace.SMEM),  # G  (scalars)
        ],
        out_specs=(
            pl.BlockSpec((dim, tb), lambda i: (0, i)),          # z_out tile
            pl.BlockSpec((1, tb), lambda i: (0, i)),            # log_det tile
        ),
        out_shape=(
            jax.ShapeDtypeStruct((dim, b_pad), jnp.float32),
            jax.ShapeDtypeStruct((1, b_pad), jnp.float32),
        ),
        compiler_params=pltpu.CompilerParams(
            dimension_semantics=("parallel",),   # shard batch tiles across TCs (v7x)
        ),
    )(zt, w, ut, b_flat, g)

    return zt_out[:, :B].T, ld_out[0, :B]


def _reference(z, w, u, b):
    """Pure-JAX reference mirroring the PyTorch module loop exactly."""
    ld = jnp.zeros((z.shape[0],), jnp.float32)
    for k in range(w.shape[0]):
        wzb = jnp.sum(w[k] * z, axis=1) + b[k, 0]
        t = jnp.tanh(wzb)
        ld = ld + jnp.log(jnp.abs(1.0 + jnp.sum(u[k] * w[k]) * (1.0 - t ** 2)))
        z = z + u[k][None, :] * t[:, None]
    return z, ld


if __name__ == "__main__":
    B, dim, n_flows = 8, 16, 4

    key = jax.random.PRNGKey(0)
    kz, kw, ku, kb = jax.random.split(key, 4)
    z = jax.random.normal(kz, (B, dim), dtype=jnp.float32)
    w = jax.random.normal(kw, (n_flows, dim), dtype=jnp.float32)
    u = jax.random.normal(ku, (n_flows, dim), dtype=jnp.float32)
    b = jax.random.normal(kb, (n_flows, 1), dtype=jnp.float32)

    z_out, log_det = normalizing_flow_forward(z, w, u, b)
    jax.block_until_ready((z_out, log_det))

    z_ref, ld_ref = _reference(z, w, u, b)
    # Incremental-algebra rewrite changes FP summation order slightly.
    assert jnp.allclose(z_out, z_ref, atol=1e-4, rtol=1e-4), \
        float(jnp.max(jnp.abs(z_out - z_ref)))
    assert jnp.allclose(log_det, ld_ref, atol=1e-4, rtol=1e-4), \
        float(jnp.max(jnp.abs(log_det - ld_ref)))

    print("KERNEL_OK")
</pallas_src>

<mosaic_0001>
module attributes {stable_mosaic.version = 11 : i64} {
  func.func @_nf_kernel(%arg0: i32, %arg1: memref<16x128xf32, #tpu.memory_space<vmem>>, %arg2: memref<4x16xf32, #tpu.memory_space<vmem>>, %arg3: memref<16x4xf32, #tpu.memory_space<vmem>>, %arg4: memref<4xf32, #tpu.memory_space<smem>>, %arg5: memref<4x4xf32, #tpu.memory_space<smem>>, %arg6: memref<16x128xf32, #tpu.memory_space<vmem>>, %arg7: memref<1x128xf32, #tpu.memory_space<vmem>>) attributes {dimension_semantics = [#tpu.dimension_semantics<parallel>], iteration_bounds = array<i64: 1>, scalar_prefetch = 0 : i64, scratch_operands = 0 : i64, tpu.core_type = #tpu.core_type<tc>, window_params = [{transform_indices = @transform_0, window_bounds = array<i64: 16, 128>}, {pipeline_mode = #tpu.pipeline_mode<synchronous>, transform_indices = @transform_1, window_bounds = array<i64: 4, 16>}, {pipeline_mode = #tpu.pipeline_mode<synchronous>, transform_indices = @transform_2, window_bounds = array<i64: 16, 4>}, {transform_indices = @transform_3, window_bounds = array<i64: 4>}, {transform_indices = @transform_4, window_bounds = array<i64: 4, 4>}, {transform_indices = @transform_5, window_bounds = array<i64: 16, 128>}, {transform_indices = @transform_6, window_bounds = array<i64: 1, 128>}]} {
    %c0 = arith.constant 0 : index
    %c0_0 = arith.constant 0 : index
    %0 = vector.load %arg1[%c0, %c0_0] : memref<16x128xf32, #tpu.memory_space<vmem>>, vector<16x128xf32>
    %c0_1 = arith.constant 0 : index
    %c0_2 = arith.constant 0 : index
    %1 = vector.load %arg2[%c0_1, %c0_2] : memref<4x16xf32, #tpu.memory_space<vmem>>, vector<4x16xf32>
    %cst = arith.constant dense<0.000000e+00> : vector<4x128xf32>
    %2 = tpu.matmul %1, %0, %cst {dimension_numbers = #tpu.dot_dimension_numbers<[1], [0], [0], [1], [0, 0, 1, 1], [], []>} : vector<4x16xf32>, vector<16x128xf32>, vector<4x128xf32> -> vector<4x128xf32>
    %c0_3 = arith.constant 0 : index
    %c0_4 = arith.constant 0 : index
    %3 = vector.load %arg3[%c0_3, %c0_4] : memref<16x4xf32, #tpu.memory_space<vmem>>, vector<16x4xf32>
    %cst_5 = arith.constant 0.000000e+00 : f32
    %4 = vector.broadcast %cst_5 : f32 to vector<1x128xf32>
    %cst_6 = arith.constant 0.000000e+00 : f32
    %5 = vector.broadcast %cst_6 : f32 to vector<16x128xf32>
    %6 = vector.extract_strided_slice %2 {offsets = [0, 0], sizes = [1, 128], strides = [1, 1]} : vector<4x128xf32> to vector<1x128xf32>
    %c0_7 = arith.constant 0 : index
    %7 = memref.load %arg4[%c0_7] : memref<4xf32, #tpu.memory_space<smem>>
    %8 = vector.broadcast %7 : f32 to vector<1x128xf32>
    %9 = arith.addf %6, %8 : vector<1x128xf32>
    %10 = math.tanh %9 : vector<1x128xf32>
    %c0_8 = arith.constant 0 : index
    %c0_9 = arith.constant 0 : index
    %11 = memref.load %arg5[%c0_8, %c0_9] : memref<4x4xf32, #tpu.memory_space<smem>>
    %12 = arith.mulf %10, %10 : vector<1x128xf32>
    %cst_10 = arith.constant 1.000000e+00 : f32
    %13 = vector.broadcast %cst_10 : f32 to vector<1x128xf32>
    %14 = arith.subf %13, %12 : vector<1x128xf32>
    %15 = vector.broadcast %11 : f32 to vector<1x128xf32>
    %16 = arith.mulf %15, %14 : vector<1x128xf32>
    %cst_11 = arith.constant 1.000000e+00 : f32
    %17 = vector.broadcast %cst_11 : f32 to vector<1x128xf32>
    %18 = arith.addf %17, %16 : vector<1x128xf32>
    %19 = math.absf %18 : vector<1x128xf32>
    %20 = math.log %19 : vector<1x128xf32>
    %21 = arith.addf %4, %20 : vector<1x128xf32>
    %22 = vector.extract_strided_slice %3 {offsets = [0, 0], sizes = [16, 1], strides = [1, 1]} : vector<16x4xf32> to vector<16x1xf32>
    %23 = vector.broadcast %22 : vector<16x1xf32> to vector<16x128xf32>
    %24 = vector.broadcast %10 : vector<1x128xf32> to vector<16x128xf32>
    %25 = arith.mulf %23, %24 : vector<16x128xf32>
    %26 = arith.addf %5, %25 : vector<16x128xf32>
    %27 = vector.extract_strided_slice %2 {offsets = [1, 0], sizes = [1, 128], strides = [1, 1]} : vector<4x128xf32> to vector<1x128xf32>
    %c1 = arith.constant 1 : index
    %28 = memref.load %arg4[%c1] : memref<4xf32, #tpu.memory_space<smem>>
    %29 = vector.broadcast %28 : f32 to vector<1x128xf32>
    %30 = arith.addf %27, %29 : vector<1x128xf32>
    %c1_12 = arith.constant 1 : index
    %c0_13 = arith.constant 0 : index
    %31 = memref.load %arg5[%c1_12, %c0_13] : memref<4x4xf32, #tpu.memory_space<smem>>
    %32 = vector.broadcast %31 : f32 to vector<1x128xf32>
    %33 = arith.mulf %32, %10 : vector<1x128xf32>
    %34 = arith.addf %30, %33 : vector<1x128xf32>
    %35 = math.tanh %34 : vector<1x128xf32>
    %c1_14 = arith.constant 1 : index
    %c1_15 = arith.constant 1 : index
    %36 = memref.load %arg5[%c1_14, %c1_15] : memref<4x4xf32, #tpu.memory_space<smem>>
    %37 = arith.mulf %35, %35 : vector<1x128xf32>
    %cst_16 = arith.constant 1.000000e+00 : f32
    %38 = vector.broadcast %cst_16 : f32 to vector<1x128xf32>
    %39 = arith.subf %38, %37 : vector<1x128xf32>
    %40 = vector.broadcast %36 : f32 to vector<1x128xf32>
    %41 = arith.mulf %40, %39 : vector<1x128xf32>
    %cst_17 = arith.constant 1.000000e+00 : f32
    %42 = vector.broadcast %cst_17 : f32 to vector<1x128xf32>
    %43 = arith.addf %42, %41 : vector<1x128xf32>
    %44 = math.absf %43 : vector<1x128xf32>
    %45 = math.log %44 : vector<1x128xf32>
    %46 = arith.addf %21, %45 : vector<1x128xf32>
    %47 = vector.extract_strided_slice %3 {offsets = [0, 1], sizes = [16, 1], strides = [1, 1]} : vector<16x4xf32> to vector<16x1xf32>
    %48 = vector.broadcast %47 : vector<16x1xf32> to vector<16x128xf32>
    %49 = vector.broadcast %35 : vector<1x128xf32> to vector<16x128xf32>
    %50 = arith.mulf %48, %49 : vector<16x128xf32>
    %51 = arith.addf %26, %50 : vector<16x128xf32>
    %52 = vector.extract_strided_slice %2 {offsets = [2, 0], sizes = [1, 128], strides = [1, 1]} : vector<4x128xf32> to vector<1x128xf32>
    %c2 = arith.constant 2 : index
    %53 = memref.load %arg4[%c2] : memref<4xf32, #tpu.memory_space<smem>>
    %54 = vector.broadcast %53 : f32 to vector<1x128xf32>
    %55 = arith.addf %52, %54 : vector<1x128xf32>
    %c2_18 = arith.constant 2 : index
    %c0_19 = arith.constant 0 : index
    %56 = memref.load %arg5[%c2_18, %c0_19] : memref<4x4xf32, #tpu.memory_space<smem>>
    %57 = vector.broadcast %56 : f32 to vector<1x128xf32>
    %58 = arith.mulf %57, %10 : vector<1x128xf32>
    %59 = arith.addf %55, %58 : vector<1x128xf32>
    %c2_20 = arith.constant 2 : index
    %c1_21 = arith.constant 1 : index
    %60 = memref.load %arg5[%c2_20, %c1_21] : memref<4x4xf32, #tpu.memory_space<smem>>
    %61 = vector.broadcast %60 : f32 to vector<1x128xf32>
    %62 = arith.mulf %61, %35 : vector<1x128xf32>
    %63 = arith.addf %59, %62 : vector<1x128xf32>
    %64 = math.tanh %63 : vector<1x128xf32>
    %c2_22 = arith.constant 2 : index
    %c2_23 = arith.constant 2 : index
    %65 = memref.load %arg5[%c2_22, %c2_23] : memref<4x4xf32, #tpu.memory_space<smem>>
    %66 = arith.mulf %64, %64 : vector<1x128xf32>
    %cst_24 = arith.constant 1.000000e+00 : f32
    %67 = vector.broadcast %cst_24 : f32 to vector<1x128xf32>
    %68 = arith.subf %67, %66 : vector<1x128xf32>
    %69 = vector.broadcast %65 : f32 to vector<1x128xf32>
    %70 = arith.mulf %69, %68 : vector<1x128xf32>
    %cst_25 = arith.constant 1.000000e+00 : f32
    %71 = vector.broadcast %cst_25 : f32 to vector<1x128xf32>
    %72 = arith.addf %71, %70 : vector<1x128xf32>
    %73 = math.absf %72 : vector<1x128xf32>
    %74 = math.log %73 : vector<1x128xf32>
    %75 = arith.addf %46, %74 : vector<1x128xf32>
    %76 = vector.extract_strided_slice %3 {offsets = [0, 2], sizes = [16, 1], strides = [1, 1]} : vector<16x4xf32> to vector<16x1xf32>
    %77 = vector.broadcast %76 : vector<16x1xf32> to vector<16x128xf32>
    %78 = vector.broadcast %64 : vector<1x128xf32> to vector<16x128xf32>
    %79 = arith.mulf %77, %78 : vector<16x128xf32>
    %80 = arith.addf %51, %79 : vector<16x128xf32>
    %81 = vector.extract_strided_slice %2 {offsets = [3, 0], sizes = [1, 128], strides = [1, 1]} : vector<4x128xf32> to vector<1x128xf32>
    %c3 = arith.constant 3 : index
    %82 = memref.load %arg4[%c3] : memref<4xf32, #tpu.memory_space<smem>>
    %83 = vector.broadcast %82 : f32 to vector<1x128xf32>
    %84 = arith.addf %81, %83 : vector<1x128xf32>
    %c3_26 = arith.constant 3 : index
    %c0_27 = arith.constant 0 : index
    %85 = memref.load %arg5[%c3_26, %c0_27] : memref<4x4xf32, #tpu.memory_space<smem>>
    %86 = vector.broadcast %85 : f32 to vector<1x128xf32>
    %87 = arith.mulf %86, %10 : vector<1x128xf32>
    %88 = arith.addf %84, %87 : vector<1x128xf32>
    %c3_28 = arith.constant 3 : index
    %c1_29 = arith.constant 1 : index
    %89 = memref.load %arg5[%c3_28, %c1_29] : memref<4x4xf32, #tpu.memory_space<smem>>
    %90 = vector.broadcast %89 : f32 to vector<1x128xf32>
    %91 = arith.mulf %90, %35 : vector<1x128xf32>
    %92 = arith.addf %88, %91 : vector<1x128xf32>
    %c3_30 = arith.constant 3 : index
    %c2_31 = arith.constant 2 : index
    %93 = memref.load %arg5[%c3_30, %c2_31] : memref<4x4xf32, #tpu.memory_space<smem>>
    %94 = vector.broadcast %93 : f32 to vector<1x128xf32>
    %95 = arith.mulf %94, %64 : vector<1x128xf32>
    %96 = arith.addf %92, %95 : vector<1x128xf32>
    %97 = math.tanh %96 : vector<1x128xf32>
    %c3_32 = arith.constant 3 : index
    %c3_33 = arith.constant 3 : index
    %98 = memref.load %arg5[%c3_32, %c3_33] : memref<4x4xf32, #tpu.memory_space<smem>>
    %99 = arith.mulf %97, %97 : vector<1x128xf32>
    %cst_34 = arith.constant 1.000000e+00 : f32
    %100 = vector.broadcast %cst_34 : f32 to vector<1x128xf32>
    %101 = arith.subf %100, %99 : vector<1x128xf32>
    %102 = vector.broadcast %98 : f32 to vector<1x128xf32>
    %103 = arith.mulf %102, %101 : vector<1x128xf32>
    %cst_35 = arith.constant 1.000000e+00 : f32
    %104 = vector.broadcast %cst_35 : f32 to vector<1x128xf32>
    %105 = arith.addf %104, %103 : vector<1x128xf32>
    %106 = math.absf %105 : vector<1x128xf32>
    %107 = math.log %106 : vector<1x128xf32>
    %108 = arith.addf %75, %107 : vector<1x128xf32>
    %109 = vector.extract_strided_slice %3 {offsets = [0, 3], sizes = [16, 1], strides = [1, 1]} : vector<16x4xf32> to vector<16x1xf32>
    %110 = vector.broadcast %109 : vector<16x1xf32> to vector<16x128xf32>
    %111 = vector.broadcast %97 : vector<1x128xf32> to vector<16x128xf32>
    %112 = arith.mulf %110, %111 : vector<16x128xf32>
    %113 = arith.addf %80, %112 : vector<16x128xf32>
    %114 = arith.addf %0, %113 : vector<16x128xf32>
    %c0_36 = arith.constant 0 : index
    %c0_37 = arith.constant 0 : index
    %115 = vector.load %arg6[%c0_36, %c0_37] : memref<16x128xf32, #tpu.memory_space<vmem>>, vector<16x128xf32>
    tpu.vector_store %arg6[%c0_36, %c0_37], %114 {strides = array<i32>} : memref<16x128xf32, #tpu.memory_space<vmem>>, vector<16x128xf32>,
    %c0_38 = arith.constant 0 : index
    %c0_39 = arith.constant 0 : index
    %116 = vector.load %arg7[%c0_38, %c0_39] : memref<1x128xf32, #tpu.memory_space<vmem>>, vector<1x128xf32>
    tpu.vector_store %arg7[%c0_38, %c0_39], %108 {strides = array<i32>} : memref<1x128xf32, #tpu.memory_space<vmem>>, vector<1x128xf32>,
    return
  }
  func.func @transform_0(%arg0: i32) -> (i32, i32) {
    %c0_i32 = arith.constant 0 : i32
    %c0_i32_0 = arith.constant 0 : i32
    return %c0_i32, %arg0 : i32, i32
  }
  func.func @transform_1(%arg0: i32) -> (i32, i32) {
    %c0_i32 = arith.constant 0 : i32
    %c0_i32_0 = arith.constant 0 : i32
    %c0_i32_1 = arith.constant 0 : i32
    return %c0_i32, %c0_i32_0 : i32, i32
  }
  func.func @transform_2(%arg0: i32) -> (i32, i32) {
    %c0_i32 = arith.constant 0 : i32
    %c0_i32_0 = arith.constant 0 : i32
    %c0_i32_1 = arith.constant 0 : i32
    return %c0_i32, %c0_i32_0 : i32, i32
  }
  func.func @transform_3(%arg0: i32) -> i32 {
    %c0_i32 = arith.constant 0 : i32
    %c0_i32_0 = arith.constant 0 : i32
    return %c0_i32 : i32
  }
  func.func @transform_4(%arg0: i32) -> (i32, i32) {
    %c0_i32 = arith.constant 0 : i32
    %c0_i32_0 = arith.constant 0 : i32
    %c0_i32_1 = arith.constant 0 : i32
    return %c0_i32, %c0_i32_0 : i32, i32
  }
  func.func @transform_5(%arg0: i32) -> (i32, i32) {
    %c0_i32 = arith.constant 0 : i32
    %c0_i32_0 = arith.constant 0 : i32
    return %c0_i32, %arg0 : i32, i32
  }
  func.func @transform_6(%arg0: i32) -> (i32, i32) {
    %c0_i32 = arith.constant 0 : i32
    %c0_i32_0 = arith.constant 0 : i32
    return %c0_i32, %arg0 : i32, i32
  }
}

</mosaic_0001>

<llo_original>
// kernel: tpu_custom_call.1
$region0: #{tpu_custom_call.1}
  #allocation0 [shape = 'u32[]', space=smem, size = 0x4, offset = 0x4, fixed_abs, tag = 'smem constant byte address 0x4 - core index']
  #allocation1 [shape = 'u32[144,128]{1,0:T(1,128)}', space=vmem, size = 0x12000, scoped, tag = 'internal scratch']
  %s0 = inlined_call_operand.vmem [shape: f32[16,128], index: 0, kind: input, shape index: {}]
  %s1 = inlined_call_operand.vmem [shape: f32[4,16], index: 1, kind: input, shape index: {}]
  %s2 = inlined_call_operand.vmem [shape: f32[16,4], index: 2, kind: input, shape index: {}]
  %s3 = inlined_call_operand.vmem [shape: f32[4], index: 3, kind: input, shape index: {}]
  %s4 = inlined_call_operand.vmem [shape: f32[4,4], index: 4, kind: input, shape index: {}]
  %s5 = inlined_call_operand.hbm [shape: f32[16,128], index: 5, kind: output, shape index: {0}]
  %s6 = inlined_call_operand.hbm [shape: f32[1,128], index: 6, kind: output, shape index: {1}]
  %7 = xla_tuple %s5, %s6
  %s8 = sld [smem:[#allocation0]]
  $region46: #{tpu_custom_call.1} parent=0
    _
  %s10 = ssub.s32 1, %s8
  %s11 = scalar_select 0, %s10, %s8
  $region1: #{tpu_custom_call.1} parent=0
    #allocation2 [shape = 'u8[512]{0}', space=smem, size = 0x200, scoped, tag = 'input window, operand 3, single buffered']
    #allocation3 [shape = 's32[1]{0}', space=sflag, size = 0x4, scoped, tag = 'scoped memory for tpu_custom_call.1']
    #allocation4 [shape = 's32[1]{0}', space=sflag, size = 0x4, scoped, tag = 'scoped memory for tpu_custom_call.1']
    #allocation5 [shape = 'u8[2048]{0}', space=smem, size = 0x800, scoped, tag = 'input window, operand 4, single buffered']
    #allocation6 [shape = 's32[1]{0}', space=sflag, size = 0x4, scoped, tag = 'scoped memory for tpu_custom_call.1']
    #allocation7 [shape = 'u8[8192]{0}', space=vmem, size = 0x2000, scoped, tag = 'output window, operand 0, single buffered']
    #allocation8 [shape = 'u8[512]{0}', space=vmem, size = 0x400, scoped, tag = 'output window, operand 1, single buffered']
    #allocation9 [shape = 's32[1]{0}', space=sflag, size = 0x4, scoped, tag = 'scoped memory for tpu_custom_call.1']
    %12 = vsyncpa [#allocation4], 0
    %13 = vsyncpa [#allocation6], 0
    %14 = vsyncpa [#allocation3], 0
    %15 = vsyncpa [#allocation9], 0
    // Predicated region
    $region2: #{tpu_custom_call.1} parent=1 // pred_check
      _
    $region3: #{tpu_custom_call.1} parent=1 // pred_check_branch
      %17 = sbr.rel (0) target = $region5
    $region4: #{tpu_custom_call.1} parent=1 // pred_region
      _
    $region5: #{tpu_custom_call.1} parent=1 // pred_fallthru
      _
    // Predicated region
    $region6: #{tpu_custom_call.1} parent=1 // pred_check
      _
    $region7: #{tpu_custom_call.1} parent=1 // pred_check_branch
      %19 = sbr.rel (0) target = $region9
    $region8: #{tpu_custom_call.1} parent=1 // pred_region
      _
    $region9: #{tpu_custom_call.1} parent=1 // pred_fallthru
      _
    // Predicated region
    $region10: #{tpu_custom_call.1} parent=1 // pred_check
      _
    $region11: #{tpu_custom_call.1} parent=1 // pred_check_branch
      %21 = sbr.rel (0) target = $region13
    $region12: #{tpu_custom_call.1} parent=1 // pred_region
      _
    $region13: #{tpu_custom_call.1} parent=1 // pred_fallthru
      _
    // Predicated region
    $region14: #{tpu_custom_call.1} parent=1 // pred_check
      _
    $region15: #{tpu_custom_call.1} parent=1 // pred_check_branch
      %23 = sbr.rel (0) target = $region17
    $region16: #{tpu_custom_call.1} parent=1 // pred_region
      %s25 = ssub.s32 16, 16
      %26 = vsyncadd [#allocation4], %s25
      %s28 = sshll.u32 %s3, 4
      %s29 = int_to_ptr.vmem [resolvable:$true] %s28
      %31 = dma.vmem_to_smem %s29, 16, [#allocation2], [#allocation4]
    $region17: #{tpu_custom_call.1} parent=1 // pred_fallthru
      _
    // Predicated region
    $region18: #{tpu_custom_call.1} parent=1 // pred_check
      _
    $region19: #{tpu_custom_call.1} parent=1 // pred_check_branch
      %33 = sbr.rel (0) target = $region21
    $region20: #{tpu_custom_call.1} parent=1 // pred_region
      %s35 = ssub.s32 64, 64
      %36 = vsyncadd [#allocation6], %s35
      %s38 = sshll.u32 %s4, 4
      %s39 = int_to_ptr.vmem [resolvable:$true] %s38
      %41 = dma.vmem_to_smem %s39, 64, [#allocation5], [#allocation6]
    $region21: #{tpu_custom_call.1} parent=1 // pred_fallthru
      _
    // Predicated region
    $region22: #{tpu_custom_call.1} parent=1 // pred_check
      _
    $region23: #{tpu_custom_call.1} parent=1 // pred_check_branch
      %43 = sbr.rel (0) target = $region25
    $region24: #{tpu_custom_call.1} parent=1 // pred_region
      %44 = dma.done [#allocation4], 16
    $region25: #{tpu_custom_call.1} parent=1 // pred_fallthru
      _
    // Predicated region
    $region26: #{tpu_custom_call.1} parent=1 // pred_check
      _
    $region27: #{tpu_custom_call.1} parent=1 // pred_check_branch
      %46 = sbr.rel (0) target = $region29
    $region28: #{tpu_custom_call.1} parent=1 // pred_region
      %47 = dma.done [#allocation6], 64
    $region29: #{tpu_custom_call.1} parent=1 // pred_fallthru
      _
    %48 = sfence
    %v49 = vld [vmem:[%s0] sm:$0xff]
    %v50 = vld [vmem:[%s0 + $0x8] sm:$0xff]
    %v51 = vld [vmem:[%s1] sm:$0xf]
    %vm52 = vcmask 130048
    %v54 = vsel %vm52, %v51, 0
    %56 = vmatprep.subr.mxu0 0.0
    %57 = vmatpush1.msra.mxu0 %v49
    %58 = vmatprep.subr.mxu0 0.0
    %59 = vmatpush1.msra.mxu0 %v50
    %60 = vmatprep.subr.mxu0 0.0
    %61 = vmatpush1.msra.mxu0 0.0
    %62 = vmatprep.subr.mxu0 0.0
    %63 = vmatpush1.msra.mxu0 0.0
    %64 = vmatprep.subr.mxu0 0.0
    %65 = vmatpush1.msra.mxu0 0.0
    %66 = vmatprep.subr.mxu0 0.0
    %67 = vmatpush1.msra.mxu0 0.0
    %68 = vmatprep.subr.mxu0 0.0
    %69 = vmatpush1.msra.mxu0 0.0
    %70 = vmatprep.subr.mxu0 0.0
    %71 = vmatpush1.msra.mxu0 0.0
    %72 = vmatprep.subr.mxu0 0.0
    %73 = vmatpush1.msra.mxu0 0.0
    %74 = vmatprep.subr.mxu0 0.0
    %75 = vmatpush1.msra.mxu0 0.0
    %76 = vmatprep.subr.mxu0 0.0
    %77 = vmatpush1.msra.mxu0 0.0
    %78 = vmatprep.subr.mxu0 0.0
    %79 = vmatpush1.msra.mxu0 0.0
    %80 = vmatprep.subr.mxu0 0.0
    %81 = vmatpush1.msra.mxu0 0.0
    %82 = vmatprep.subr.mxu0 0.0
    %83 = vmatpush1.msra.mxu0 0.0
    %84 = vmatprep.subr.mxu0 0.0
    %85 = vmatpush1.msra.mxu0 0.0
    %86 = vmatprep.subr.mxu0 0.0
    %87 = vmatpush1.msra.mxu0 0.0
    %88 = vmatprep.subr.mxu0 0.0
    %89 = vmatpush1.msra.mxu0 0.0
    %90 = vmatprep.subr.mxu0 0.0
    %91 = vmatpush1.msra.mxu0 0.0
    %92 = vmatprep.subr.mxu0 0.0
    %93 = vmatpush1.msra.mxu0 0.0
    %94 = vmatprep.subr.mxu0 0.0
    %95 = vmatpush1.msra.mxu0 0.0
    %96 = vmatprep.subr.mxu0 0.0
    %97 = vmatpush1.msra.mxu0 0.0
    %98 = vmatprep.subr.mxu0 0.0
    %99 = vmatpush1.msra.mxu0 0.0
    %100 = vmatprep.subr.mxu0 0.0
    %101 = vmatpush1.msra.mxu0 0.0
    %102 = vmatprep.subr.mxu0 0.0
    %103 = vmatpush1.msra.mxu0 0.0
    %104 = vmatprep.subr.mxu0 0.0
    %105 = vmatpush1.msra.mxu0 0.0
    %106 = vmatprep.subr.mxu0 0.0
    %107 = vmatpush1.msra.mxu0 0.0
    %108 = vmatprep.subr.mxu0 0.0
    %109 = vmatpush1.msra.mxu0 0.0
    %110 = vmatprep.subr.mxu0 0.0
    %111 = vmatpush1.msra.mxu0 0.0
    %112 = vmatprep.subr.mxu0 0.0
    %113 = vmatpush1.msra.mxu0 0.0
    %114 = vmatprep.subr.mxu0 0.0
    %115 = vmatpush1.msra.mxu0 0.0
    %116 = vmatprep.subr.mxu0 0.0
    %117 = vmatpush1.msra.mxu0 0.0
    %118 = vmatprep.subr.mxu0 0.0
    %119 = vmatpush1.msra.mxu0 0.0
    %120 = vmatprep.mubr.f32.mxu0 0.0
    %121 = vmatmul.mubr.f32.gmra.mrb[0].mxu0 %v54
    %v122 = vpop.f32.mrb[0].mxu0
    %v123 = vadd.f32 0.0, %v122
    %v124 = vpop.f32.mrb[0].mxu0
    %125 = vdwg.mxu0
    %v126 = vld [vmem:[%s2] sm:$0xff]
    %v127 = vld [vmem:[%s2 + $0x8] sm:$0xff]
    %s128 = sld [smem:[#allocation2]]
    %v129 = vstv %s128
    %v130 = vadd.f32 %v123, %v129
    %v131 = vtanh.pop %v130
    %s132 = sld [smem:[#allocation5]]
    %v133 = vmul.f32 %v131, %v131
    %v134 = vsub.f32 1.0, %v133
    %v135 = vstv %s132
    %v136 = vmul.f32 %v135, %v134
    %v137 = vadd.f32 %v136, 1.0
    %v138 = vand.u32 2147483647, %v137
    %v139 = vlog2.pop %v138
    %v140 = vmul.f32 %v139, 0.6931472
    %v141 = vadd.f32 %v140, 0.0
    %143 = vset.pattern.permute.xlu0 0
    %144 = vperm.xlu0 %143, %v126
    %v145 = vpop.permute.xlu0 %144
    %148 = vset.pattern.permute.xlu0 0
    %149 = vperm.xlu0 %148, %v127
    %v150 = vpop.permute.xlu0 %149
    %v152 = vlaneseq
    %v153 = vshrl.u32 %v152, 7
    %v154 = vsub.s32 0, %v153
    %v155 = vrot.slane %v131, %v154
    %v156 = vmul.f32 %v145, %v155
    %v157 = vmul.f32 %v150, %v155
    %v158 = vadd.f32 %v156, 0.0
    %v159 = vadd.f32 %v157, 0.0
    %s160 = sld [smem:[#allocation2 + $0x1]]
    %v161 = vstv %s160
    %v162 = vadd.f32 %v123, %v161
    %s163 = sld [smem:[#allocation5 + $0x80]]
    %v164 = vstv %s163
    %v165 = vmul.f32 %v164, %v131
    %v167 = vrot.slane %v165, 7
    %v169 = vadd.f32 %v162, %v167
    %v170 = vtanh.pop %v169
    %s171 = sld [smem:[#allocation5 + $0x81]]
    %v172 = vmul.f32 %v170, %v170
    %v173 = vsub.f32 1.0, %v172
    %v174 = vstv %s171
    %v175 = vmul.f32 %v174, %v173
    %v176 = vadd.f32 %v175, 1.0
    %v177 = vand.u32 2147483647, %v176
    %v178 = vlog2.pop %v177
    %v179 = vmul.f32 %v178, 0.6931472
    %v181 = vrot.slane %v179, 1
    %v183 = vadd.f32 %v141, %v181
    %184 = vset.pattern.permute.xlu0 1
    %185 = vperm.xlu0 %184, %v126
    %v186 = vpop.permute.xlu0 %185
    %188 = vset.pattern.permute.xlu0 1
    %189 = vperm.xlu0 %188, %v127
    %v190 = vpop.permute.xlu0 %189
    %v192 = vlaneseq
    %v193 = vshrl.u32 %v192, 7
    %v194 = vsub.s32 1, %v193
    %v195 = vrot.slane %v170, %v194
    %v196 = vmul.f32 %v186, %v195
    %v197 = vmul.f32 %v190, %v195
    %v198 = vadd.f32 %v158, %v196
    %v199 = vadd.f32 %v159, %v197
    %s200 = sld [smem:[#allocation2 + $0x2]]
    %v201 = vstv %s200
    %v202 = vadd.f32 %v123, %v201
    %s203 = sld [smem:[#allocation5 + $0x100]]
    %v204 = vstv %s203
    %v205 = vmul.f32 %v204, %v131
    %v207 = vrot.slane %v205, 6
    %v209 = vadd.f32 %v202, %v207
    %s210 = sld [smem:[#allocation5 + $0x101]]
    %v211 = vstv %s210
    %v212 = vmul.f32 %v211, %v170
    %v214 = vrot.slane %v212, 7
    %v216 = vadd.f32 %v209, %v214
    %v217 = vtanh.pop %v216
    %s218 = sld [smem:[#allocation5 + $0x102]]
    %v219 = vmul.f32 %v217, %v217
    %v220 = vsub.f32 1.0, %v219
    %v221 = vstv %s218
    %v222 = vmul.f32 %v221, %v220
    %v223 = vadd.f32 %v222, 1.0
    %v224 = vand.u32 2147483647, %v223
    %v225 = vlog2.pop %v224
    %v226 = vmul.f32 %v225, 0.6931472
    %v228 = vrot.slane %v226, 2
    %v230 = vadd.f32 %v183, %v228
    %231 = vset.pattern.permute.xlu0 2
    %232 = vperm.xlu0 %231, %v126
    %v233 = vpop.permute.xlu0 %232
    %235 = vset.pattern.permute.xlu0 2
    %236 = vperm.xlu0 %235, %v127
    %v237 = vpop.permute.xlu0 %236
    %v239 = vlaneseq
    %v240 = vshrl.u32 %v239, 7
    %v241 = vsub.s32 2, %v240
    %v242 = vrot.slane %v217, %v241
    %v243 = vmul.f32 %v233, %v242
    %v244 = vmul.f32 %v237, %v242
    %v245 = vadd.f32 %v198, %v243
    %v246 = vadd.f32 %v199, %v244
    %s247 = sld [smem:[#allocation2 + $0x3]]
    %v248 = vstv %s247
    %v249 = vadd.f32 %v123, %v248
    %s250 = sld [smem:[#allocation5 + $0x180]]
    %v251 = vstv %s250
    %v252 = vmul.f32 %v251, %v131
    %v254 = vrot.slane %v252, 5
    %v256 = vadd.f32 %v249, %v254
    %s257 = sld [smem:[#allocation5 + $0x181]]
    %v258 = vstv %s257
    %v259 = vmul.f32 %v258, %v170
    %v261 = vrot.slane %v259, 6
    %v263 = vadd.f32 %v256, %v261
    %s264 = sld [smem:[#allocation5 + $0x182]]
    %v265 = vstv %s264
    %v266 = vmul.f32 %v265, %v217
    %v268 = vrot.slane %v266, 7
    %v270 = vadd.f32 %v263, %v268
    %v271 = vtanh.pop %v270
    %s272 = sld [smem:[#allocation5 + $0x183]]
    %v273 = vmul.f32 %v271, %v271
    %v274 = vsub.f32 1.0, %v273
    %v275 = vstv %s272
    %v276 = vmul.f32 %v275, %v274
    %v277 = vadd.f32 %v276, 1.0
    %v278 = vand.u32 2147483647, %v277
    %v279 = vlog2.pop %v278
    %v280 = vmul.f32 %v279, 0.6931472
    %v282 = vrot.slane %v280, 3
    %v284 = vadd.f32 %v230, %v282
    %285 = vset.pattern.permute.xlu0 3
    %286 = vperm.xlu0 %285, %v126
    %v287 = vpop.permute.xlu0 %286
    %289 = vset.pattern.permute.xlu0 3
    %290 = vperm.xlu0 %289, %v127
    %v291 = vpop.permute.xlu0 %290
    %v293 = vlaneseq
    %v294 = vshrl.u32 %v293, 7
    %v295 = vsub.s32 3, %v294
    %v296 = vrot.slane %v271, %v295
    %v297 = vmul.f32 %v287, %v296
    %v298 = vmul.f32 %v291, %v296
    %v299 = vadd.f32 %v245, %v297
    %v300 = vadd.f32 %v246, %v298
    %v301 = vadd.f32 %v49, %v299
    %v302 = vadd.f32 %v50, %v300
    %303 = vst [vmem:[#allocation7] sm:$0xff] %v301
    %304 = vst [vmem:[#allocation7 + $0x8] sm:$0xff] %v302
    %305 = vst [vmem:[#allocation8] sm:$0x1] %v284
    // Predicated region
    $region30: #{tpu_custom_call.1} parent=1 // pred_check
      _
    $region31: #{tpu_custom_call.1} parent=1 // pred_check_branch
      %307 = sbr.rel (0) target = $region33
    $region32: #{tpu_custom_call.1} parent=1 // pred_region
      %s309 = ssub.s32 256, 256
      %310 = vsyncadd [#allocation3], %s309
      %s311 = sshll.u32 [#allocation7], 4
      %s312 = int_to_ptr.vmem [resolvable:$true] %s311
      %317 = dma.vmem_to_hbm [thread:$0]  %s312, 256, %s5, [#allocation3], 128, 128, 8
    $region33: #{tpu_custom_call.1} parent=1 // pred_fallthru
      _
    // Predicated region
    $region34: #{tpu_custom_call.1} parent=1 // pred_check
      _
    $region35: #{tpu_custom_call.1} parent=1 // pred_check_branch
      %319 = sbr.rel (0) target = $region37
    $region36: #{tpu_custom_call.1} parent=1 // pred_region
      %s321 = ssub.s32 16, 16
      %322 = vsyncadd [#allocation9], %s321
      %s324 = sshll.u32 [#allocation8], 4
      %s325 = int_to_ptr.vmem [resolvable:$true] %s324
      %327 = dma.vmem_to_hbm [thread:$0]  %s325, 16, %s6, [#allocation9]
    $region37: #{tpu_custom_call.1} parent=1 // pred_fallthru
      _
    // Predicated region
    $region38: #{tpu_custom_call.1} parent=1 // pred_check
      _
    $region39: #{tpu_custom_call.1} parent=1 // pred_check_branch
      %329 = sbr.rel (0) target = $region41
    $region40: #{tpu_custom_call.1} parent=1 // pred_region
      %330 = dma.done [#allocation3], 256
    $region41: #{tpu_custom_call.1} parent=1 // pred_fallthru
      _
    // Predicated region
    $region42: #{tpu_custom_call.1} parent=1 // pred_check
      _
    $region43: #{tpu_custom_call.1} parent=1 // pred_check_branch
      %332 = sbr.rel (0) target = $region45
    $region44: #{tpu_custom_call.1} parent=1 // pred_region
      %333 = dma.done [#allocation9], 16
    $region45: #{tpu_custom_call.1} parent=1 // pred_fallthru
      _
    %334 = vsyncpa [#allocation3], 1
    %335 = vsyncpa [#allocation9], 1
    %336 = vsyncpa [#allocation4], 1
    %337 = vsyncpa [#allocation6], 1

</llo_original>
